<compile_context>
chip_gen: v5e
topology: v5e:2x2
jax: 0.10.0
libtpu: 0.0.40
codegen_flags: <defaults>
</compile_context>

<pallas_src>
import jax
import jax.numpy as jnp
from jax.experimental import pallas as pl
from jax.experimental.pallas import tpu as pltpu


def _round_up(x, m):
    return ((x + m - 1) // m) * m


def _joint_kernel(x_ref, wcat_ref, benc_ref, wout_ref, bout_ref, out_ref, h_ref):
    # x_ref    : [TILE_B, E+D]    compute dtype (f32 or bf16)
    # wcat_ref : [E+D, H]         compute dtype (= concat([w_enc; w_dec], axis=0))
    # benc_ref : [1, H]           f32
    # wout_ref : [H, TILE_V]      compute dtype
    # bout_ref : [1, TILE_V]      f32
    # out_ref  : [TILE_B, TILE_V] f32
    # h_ref    : [TILE_B, H]      f32 VMEM scratch (persists across the V axis)

    # h depends only on the row tile -> compute once, reuse for every V tile.
    @pl.when(pl.program_id(1) == 0)
    def _():
        acc = jnp.dot(x_ref[...], wcat_ref[...],
                      preferred_element_type=jnp.float32)
        h_ref[...] = jnp.tanh(acc + benc_ref[...])

    h = h_ref[...].astype(wout_ref.dtype)
    o = jnp.dot(h, wout_ref[...], preferred_element_type=jnp.float32)
    out_ref[...] = (o + bout_ref[...]).astype(out_ref.dtype)


def _working_set_bytes(tile_b, tile_v, ecat, h, isz):
    """Double-buffered VMEM footprint estimate for one grid step."""
    return (2 * (tile_b * ecat * isz)      # x_cat tile
            + 2 * (ecat * h * isz)         # w_cat (whole)
            + 2 * (8 * h * 4)              # b_enc (sublane-padded)
            + 2 * (h * tile_v * isz)       # w_out tile
            + 2 * (8 * tile_v * 4)         # b_out tile (sublane-padded)
            + 2 * (tile_b * tile_v * 4)    # out tile
            + tile_b * h * 4)              # h scratch


def joint_network_forward(enc_out, dec_out, params, *, use_bf16=False):
    """Pallas forward of the joint network.

    enc_out: [B, E] or [E]   (greedy/default search uses 1-D vectors)
    dec_out: [B, D] or [D]
    Returns f32 logits [B, V] (or [V] for 1-D inputs).
    """
    squeeze = enc_out.ndim == 1
    if squeeze:
        enc_out = enc_out[None, :]
        dec_out = dec_out[None, :]

    compute_dtype = jnp.bfloat16 if use_bf16 else jnp.float32
    isz = jnp.dtype(compute_dtype).itemsize

    # Fuse lin_enc / lin_dec into a single matmul with K = E + D.
    w_cat = jnp.concatenate([params["w_enc"], params["w_dec"]], axis=0)
    x_cat = jnp.concatenate([enc_out, dec_out], axis=-1)

    b_enc = params["b_enc"].reshape(1, -1).astype(jnp.float32)
    w_out = params["w_out"]
    b_out = params["b_out"].reshape(1, -1).astype(jnp.float32)

    x_cat = x_cat.astype(compute_dtype)
    w_cat = w_cat.astype(compute_dtype)
    w_out = w_out.astype(compute_dtype)

    B, Ecat = x_cat.shape
    H = w_cat.shape[1]
    V = w_out.shape[1]

    # Row tiles: multiple of 8 (sublane).
    TILE_B = min(128, _round_up(B, 8))
    Bp = _round_up(B, TILE_B)

    # Vocab tiles: largest lane-dense (128-multiple) tile up to 2048 whose
    # double-buffered working set fits a conservative VMEM budget.
    vmem_budget = 12 * 1024 * 1024
    v128 = _round_up(V, 128)
    TILE_V = 128
    for cand in (2048, 1024, 512, 256, 128):
        if cand > v128:
            continue
        if _working_set_bytes(TILE_B, cand, Ecat, H, isz) <= vmem_budget:
            TILE_V = cand
            break
    Vp = _round_up(V, TILE_V)

    if Bp != B:
        x_cat = jnp.pad(x_cat, ((0, Bp - B), (0, 0)))
    if Vp != V:
        w_out = jnp.pad(w_out, ((0, 0), (0, Vp - V)))
        b_out = jnp.pad(b_out, ((0, 0), (0, Vp - V)))

    grid = (Bp // TILE_B, Vp // TILE_V)

    # Only raise the scoped-VMEM limit when the working set actually needs it
    # (keeps headroom on v7x's smaller 64 MiB physical VMEM for small shapes).
    est = _working_set_bytes(TILE_B, TILE_V, Ecat, H, isz)
    vmem_limit = None
    if est > 14 * 1024 * 1024:
        vmem_limit = int(min(2 * est, 100 * 1024 * 1024))

    cost = pl.CostEstimate(
        flops=2 * Bp * (Ecat * H + H * Vp),
        transcendentals=Bp * H,
        bytes_accessed=(Bp * Ecat * isz + Ecat * H * isz + H * 4
                        + H * Vp * isz + Vp * 4 + Bp * Vp * 4),
    )

    out = pl.pallas_call(
        _joint_kernel,
        out_shape=jax.ShapeDtypeStruct((Bp, Vp), jnp.float32),
        grid_spec=pltpu.PrefetchScalarGridSpec(
            num_scalar_prefetch=0,
            grid=grid,
            in_specs=[
                pl.BlockSpec((TILE_B, Ecat), lambda i, j: (i, 0)),   # x_cat
                pl.BlockSpec((Ecat, H), lambda i, j: (0, 0)),        # w_cat
                pl.BlockSpec((1, H), lambda i, j: (0, 0)),           # b_enc
                pl.BlockSpec((H, TILE_V), lambda i, j: (0, j)),      # w_out
                pl.BlockSpec((1, TILE_V), lambda i, j: (0, j)),      # b_out
            ],
            out_specs=pl.BlockSpec((TILE_B, TILE_V), lambda i, j: (i, j)),
            scratch_shapes=[pltpu.VMEM((TILE_B, H), jnp.float32)],
        ),
        compiler_params=pltpu.CompilerParams(
            dimension_semantics=("parallel", "arbitrary"),
            vmem_limit_bytes=vmem_limit,
        ),
        cost_estimate=cost,
    )(x_cat, w_cat, b_enc, w_out, b_out)

    out = out[:B, :V]
    if squeeze:
        out = out[0]
    return out


def init_params(key, enc_dim, dec_dim, joint_dim, vocab_size):
    ks = jax.random.split(key, 5)
    scale = 0.05
    return {
        # stored as [in, out] (transpose of torch.nn.Linear.weight)
        "w_enc": scale * jax.random.normal(ks[0], (enc_dim, joint_dim), jnp.float32),
        "b_enc": scale * jax.random.normal(ks[1], (1, joint_dim), jnp.float32),
        "w_dec": scale * jax.random.normal(ks[2], (dec_dim, joint_dim), jnp.float32),  # no bias
        "w_out": scale * jax.random.normal(ks[3], (joint_dim, vocab_size), jnp.float32),
        "b_out": scale * jax.random.normal(ks[4], (1, vocab_size), jnp.float32),
    }


def _reference(enc_out, dec_out, p):
    if enc_out.ndim == 1:
        enc_out, dec_out, squeeze = enc_out[None], dec_out[None], True
    else:
        squeeze = False
    h = jnp.tanh(enc_out @ p["w_enc"] + p["b_enc"] + dec_out @ p["w_dec"])
    o = h @ p["w_out"] + p["b_out"]
    return o[0] if squeeze else o


if __name__ == "__main__":
    key = jax.random.PRNGKey(0)
    k_param, k_param2, k_enc, k_dec, k_enc1, k_dec1, k_enc2, k_dec2 = (
        jax.random.split(key, 8))

    # Small, module-consistent sizes.
    B, ENC_DIM, DEC_DIM, JOINT_DIM, VOCAB = 8, 32, 32, 64, 128
    params = init_params(k_param, ENC_DIM, DEC_DIM, JOINT_DIM, VOCAB)

    # ---- Batched case (search_type not in ('default','greedy')), f32 ----
    enc_out = jax.random.normal(k_enc, (B, ENC_DIM), jnp.float32)
    dec_out = jax.random.normal(k_dec, (B, DEC_DIM), jnp.float32)
    out = joint_network_forward(enc_out, dec_out, params)
    jax.block_until_ready(out)
    ref = _reference(enc_out, dec_out, params)
    assert out.shape == (B, VOCAB)
    assert jnp.allclose(out, ref, atol=1e-5, rtol=1e-5)

    # ---- 1-D case (search_type in ('default','greedy')) ----
    enc_vec = jax.random.normal(k_enc1, (ENC_DIM,), jnp.float32)
    dec_vec = jax.random.normal(k_dec1, (DEC_DIM,), jnp.float32)
    out_vec = joint_network_forward(enc_vec, dec_vec, params)
    jax.block_until_ready(out_vec)
    ref_vec = _reference(enc_vec, dec_vec, params)
    assert out_vec.shape == (VOCAB,)
    assert jnp.allclose(out_vec, ref_vec, atol=1e-5, rtol=1e-5)

    # ---- Odd shapes (exercise row / vocab padding paths), f32 ----
    B2, VOCAB2 = 5, 200
    params2 = init_params(k_param2, ENC_DIM, DEC_DIM, JOINT_DIM, VOCAB2)
    enc2 = jax.random.normal(k_enc2, (B2, ENC_DIM), jnp.float32)
    dec2 = jax.random.normal(k_dec2, (B2, DEC_DIM), jnp.float32)
    out2 = joint_network_forward(enc2, dec2, params2)
    jax.block_until_ready(out2)
    ref2 = _reference(enc2, dec2, params2)
    assert out2.shape == (B2, VOCAB2)
    assert jnp.allclose(out2, ref2, atol=1e-5, rtol=1e-5)

    # ---- bf16 MXU path (f32 accumulation / epilogue), loose tolerance ----
    out_bf = joint_network_forward(enc_out, dec_out, params, use_bf16=True)
    jax.block_until_ready(out_bf)
    assert out_bf.shape == (B, VOCAB)
    assert jnp.allclose(out_bf, ref, atol=5e-2, rtol=5e-2)

    print("KERNEL_OK")
</pallas_src>

<mosaic_0001>
module attributes {stable_mosaic.version = 11 : i64} {
  func.func @_joint_kernel(%arg0: i32, %arg1: i32, %arg2: memref<8x64xf32, #tpu.memory_space<vmem>>, %arg3: memref<64x64xf32, #tpu.memory_space<vmem>>, %arg4: memref<1x64xf32, #tpu.memory_space<vmem>>, %arg5: memref<64x128xf32, #tpu.memory_space<vmem>>, %arg6: memref<1x128xf32, #tpu.memory_space<vmem>>, %arg7: memref<8x128xf32, #tpu.memory_space<vmem>>, %arg8: memref<8x64xf32, #tpu.memory_space<vmem>>) attributes {dimension_semantics = [#tpu.dimension_semantics<parallel>, #tpu.dimension_semantics<arbitrary>], iteration_bounds = array<i64: 1, 1>, scalar_prefetch = 0 : i64, scratch_operands = 1 : i64, tpu.core_type = #tpu.core_type<tc>, window_params = [{transform_indices = @transform_0, window_bounds = array<i64: 8, 64>}, {pipeline_mode = #tpu.pipeline_mode<synchronous>, transform_indices = @transform_1, window_bounds = array<i64: 64, 64>}, {pipeline_mode = #tpu.pipeline_mode<synchronous>, transform_indices = @transform_2, window_bounds = array<i64: 1, 64>}, {transform_indices = @transform_3, window_bounds = array<i64: 64, 128>}, {transform_indices = @transform_4, window_bounds = array<i64: 1, 128>}, {transform_indices = @transform_5, window_bounds = array<i64: 8, 128>}]} {
    %c0_i32 = arith.constant 0 : i32
    %0 = arith.cmpi eq, %arg1, %c0_i32 : i32
    %1 = arith.extui %0 : i1 to i32
    %c0_i32_0 = arith.constant 0 : i32
    %2 = arith.cmpi ne, %1, %c0_i32_0 : i32
    scf.if %2 {
      %c0_8 = arith.constant 0 : index
      %c0_9 = arith.constant 0 : index
      %10 = vector.load %arg2[%c0_8, %c0_9] : memref<8x64xf32, #tpu.memory_space<vmem>>, vector<8x64xf32>
      %c0_10 = arith.constant 0 : index
      %c0_11 = arith.constant 0 : index
      %11 = vector.load %arg3[%c0_10, %c0_11] : memref<64x64xf32, #tpu.memory_space<vmem>>, vector<64x64xf32>
      %cst_12 = arith.constant dense<0.000000e+00> : vector<8x64xf32>
      %12 = tpu.matmul %10, %11, %cst_12 {dimension_numbers = #tpu.dot_dimension_numbers<[1], [0], [0], [1], [0, 0, 1, 1], [], []>} : vector<8x64xf32>, vector<64x64xf32>, vector<8x64xf32> -> vector<8x64xf32>
      %c0_13 = arith.constant 0 : index
      %c0_14 = arith.constant 0 : index
      %13 = vector.load %arg4[%c0_13, %c0_14] : memref<1x64xf32, #tpu.memory_space<vmem>>, vector<1x64xf32>
      %14 = vector.broadcast %13 : vector<1x64xf32> to vector<8x64xf32>
      %15 = arith.addf %12, %14 : vector<8x64xf32>
      %16 = math.tanh %15 : vector<8x64xf32>
      %c0_15 = arith.constant 0 : index
      %c0_16 = arith.constant 0 : index
      %17 = vector.load %arg8[%c0_15, %c0_16] : memref<8x64xf32, #tpu.memory_space<vmem>>, vector<8x64xf32>
      tpu.vector_store %arg8[%c0_15, %c0_16], %16 {strides = array<i32>} : memref<8x64xf32, #tpu.memory_space<vmem>>, vector<8x64xf32>,
    } else {
    }
    %c0 = arith.constant 0 : index
    %c0_1 = arith.constant 0 : index
    %3 = vector.load %arg8[%c0, %c0_1] : memref<8x64xf32, #tpu.memory_space<vmem>>, vector<8x64xf32>
    %c0_2 = arith.constant 0 : index
    %c0_3 = arith.constant 0 : index
    %4 = vector.load %arg5[%c0_2, %c0_3] : memref<64x128xf32, #tpu.memory_space<vmem>>, vector<64x128xf32>
    %cst = arith.constant dense<0.000000e+00> : vector<8x128xf32>
    %5 = tpu.matmul %3, %4, %cst {dimension_numbers = #tpu.dot_dimension_numbers<[1], [0], [0], [1], [0, 0, 1, 1], [], []>} : vector<8x64xf32>, vector<64x128xf32>, vector<8x128xf32> -> vector<8x128xf32>
    %c0_4 = arith.constant 0 : index
    %c0_5 = arith.constant 0 : index
    %6 = vector.load %arg6[%c0_4, %c0_5] : memref<1x128xf32, #tpu.memory_space<vmem>>, vector<1x128xf32>
    %7 = vector.broadcast %6 : vector<1x128xf32> to vector<8x128xf32>
    %8 = arith.addf %5, %7 : vector<8x128xf32>
    %c0_6 = arith.constant 0 : index
    %c0_7 = arith.constant 0 : index
    %9 = vector.load %arg7[%c0_6, %c0_7] : memref<8x128xf32, #tpu.memory_space<vmem>>, vector<8x128xf32>
    tpu.vector_store %arg7[%c0_6, %c0_7], %8 {strides = array<i32>} : memref<8x128xf32, #tpu.memory_space<vmem>>, vector<8x128xf32>,
    return
  }
  func.func @transform_0(%arg0: i32, %arg1: i32) -> (i32, i32) {
    %c0_i32 = arith.constant 0 : i32
    %c0_i32_0 = arith.constant 0 : i32
    return %arg0, %c0_i32 : i32, i32
  }
  func.func @transform_1(%arg0: i32, %arg1: i32) -> (i32, i32) {
    %c0_i32 = arith.constant 0 : i32
    %c0_i32_0 = arith.constant 0 : i32
    %c0_i32_1 = arith.constant 0 : i32
    return %c0_i32, %c0_i32_0 : i32, i32
  }
  func.func @transform_2(%arg0: i32, %arg1: i32) -> (i32, i32) {
    %c0_i32 = arith.constant 0 : i32
    %c0_i32_0 = arith.constant 0 : i32
    %c0_i32_1 = arith.constant 0 : i32
    return %c0_i32, %c0_i32_0 : i32, i32
  }
  func.func @transform_3(%arg0: i32, %arg1: i32) -> (i32, i32) {
    %c0_i32 = arith.constant 0 : i32
    %c0_i32_0 = arith.constant 0 : i32
    return %c0_i32, %arg1 : i32, i32
  }
  func.func @transform_4(%arg0: i32, %arg1: i32) -> (i32, i32) {
    %c0_i32 = arith.constant 0 : i32
    %c0_i32_0 = arith.constant 0 : i32
    return %c0_i32, %arg1 : i32, i32
  }
  func.func @transform_5(%arg0: i32, %arg1: i32) -> (i32, i32) {
    %c0_i32 = arith.constant 0 : i32
    return %arg0, %arg1 : i32, i32
  }
}

</mosaic_0001>

<llo_original>
// kernel: tpu_custom_call.1
$region0: #{tpu_custom_call.1}
  #allocation0 [shape = 'u32[]', space=smem, size = 0x4, offset = 0x4, fixed_abs, tag = 'smem constant byte address 0x4 - core index']
  #allocation1 [shape = 'u32[72,128]{1,0:T(1,128)}', space=vmem, size = 0x9000, scoped, tag = 'internal scratch']
  #allocation2 [shape = 'f32[8,64]{1,0:T(8,128)}', space=vmem, size = 0x1000, scoped, tag = 'scratch operand']
  %s0 = inlined_call_operand.hbm [shape: f32[8,64], index: 0, kind: input, shape index: {}]
  %s1 = inlined_call_operand.hbm [shape: f32[64,64], index: 1, kind: input, shape index: {}]
  %s2 = inlined_call_operand.vmem [shape: f32[1,64], index: 2, kind: input, shape index: {}]
  %s3 = inlined_call_operand.hbm [shape: f32[64,128], index: 3, kind: input, shape index: {}]
  %s4 = inlined_call_operand.vmem [shape: f32[1,128], index: 4, kind: input, shape index: {}]
  %s5 = inlined_call_operand.hbm [shape: f32[8,128], index: 5, kind: output, shape index: {}]
  %s6 = sld [smem:[#allocation0]]
  $region46: #{tpu_custom_call.1} parent=0
    _
  %s8 = ssub.s32 1, %s6
  %s9 = scalar_select 0, %s8, %s6
  $region1: #{tpu_custom_call.1} parent=0
    #allocation3 [shape = 'u8[4096]{0}', space=vmem, size = 0x1000, scoped, tag = 'input window, operand 0, single buffered']
    #allocation4 [shape = 's32[1]{0}', space=sflag, size = 0x4, scoped, tag = 'scoped memory for tpu_custom_call.1']
    #allocation5 [shape = 's32[1]{0}', space=sflag, size = 0x4, scoped, tag = 'scoped memory for tpu_custom_call.1']
    #allocation6 [shape = 'u8[32768]{0}', space=vmem, size = 0x8000, scoped, tag = 'input window, operand 1, single buffered']
    #allocation7 [shape = 's32[1]{0}', space=sflag, size = 0x4, scoped, tag = 'scoped memory for tpu_custom_call.1']
    #allocation8 [shape = 'u8[32768]{0}', space=vmem, size = 0x8000, scoped, tag = 'input window, operand 3, single buffered']
    #allocation9 [shape = 'u8[4096]{0}', space=vmem, size = 0x1000, scoped, tag = 'output window, operand 0, single buffered']
    %10 = vsyncpa [#allocation4], 0
    %11 = vsyncpa [#allocation7], 0
    %12 = vsyncpa [#allocation5], 0
    // Predicated region
    $region2: #{tpu_custom_call.1} parent=1 // pred_check
      _
    $region3: #{tpu_custom_call.1} parent=1 // pred_check_branch
      %14 = sbr.rel (0) target = $region5
    $region4: #{tpu_custom_call.1} parent=1 // pred_region
      %16 = vsyncadd [#allocation4], 0
      %s18 = sshll.u32 %s0, 4
      %s19 = int_to_ptr.hbm [resolvable:$true] %s18
      %s20 = sshll.u32 [#allocation3], 4
      %s21 = int_to_ptr.vmem [resolvable:$true] %s20
      %23 = dma.hbm_to_vmem [thread:$0]  %s19, 128, %s21, [#allocation4]
    $region5: #{tpu_custom_call.1} parent=1 // pred_fallthru
      _
    // Predicated region
    $region6: #{tpu_custom_call.1} parent=1 // pred_check
      _
    $region7: #{tpu_custom_call.1} parent=1 // pred_check_branch
      %25 = sbr.rel (0) target = $region9
    $region8: #{tpu_custom_call.1} parent=1 // pred_region
      %27 = vsyncadd [#allocation7], 0
      %s28 = sshll.u32 %s1, 4
      %s29 = int_to_ptr.hbm [resolvable:$true] %s28
      %s30 = sshll.u32 [#allocation6], 4
      %s31 = int_to_ptr.vmem [resolvable:$true] %s30
      %36 = dma.hbm_to_vmem [thread:$0]  %s29, 1024, %s31, [#allocation7], 128, 128, 8
    $region9: #{tpu_custom_call.1} parent=1 // pred_fallthru
      _
    // Predicated region
    $region10: #{tpu_custom_call.1} parent=1 // pred_check
      _
    $region11: #{tpu_custom_call.1} parent=1 // pred_check_branch
      %38 = sbr.rel (0) target = $region13
    $region12: #{tpu_custom_call.1} parent=1 // pred_region
      _
    $region13: #{tpu_custom_call.1} parent=1 // pred_fallthru
      _
    // Predicated region
    $region14: #{tpu_custom_call.1} parent=1 // pred_check
      _
    $region15: #{tpu_custom_call.1} parent=1 // pred_check_branch
      %40 = sbr.rel (0) target = $region17
    $region16: #{tpu_custom_call.1} parent=1 // pred_region
      %42 = vsyncadd [#allocation7], 0
      %s43 = sshll.u32 %s3, 4
      %s44 = int_to_ptr.hbm [resolvable:$true] %s43
      %s45 = sshll.u32 [#allocation8], 4
      %s46 = int_to_ptr.vmem [resolvable:$true] %s45
      %51 = dma.hbm_to_vmem [thread:$0]  %s44, 1024, %s46, [#allocation7], 128, 128, 8
    $region17: #{tpu_custom_call.1} parent=1 // pred_fallthru
      _
    // Predicated region
    $region18: #{tpu_custom_call.1} parent=1 // pred_check
      _
    $region19: #{tpu_custom_call.1} parent=1 // pred_check_branch
      %53 = sbr.rel (0) target = $region21
    $region20: #{tpu_custom_call.1} parent=1 // pred_region
      _
    $region21: #{tpu_custom_call.1} parent=1 // pred_fallthru
      _
    // Predicated region
    $region22: #{tpu_custom_call.1} parent=1 // pred_check
      _
    $region23: #{tpu_custom_call.1} parent=1 // pred_check_branch
      %55 = sbr.rel (0) target = $region25
    $region24: #{tpu_custom_call.1} parent=1 // pred_region
      %57 = dma.done [#allocation4], 128
    $region25: #{tpu_custom_call.1} parent=1 // pred_fallthru
      _
    // Predicated region
    $region26: #{tpu_custom_call.1} parent=1 // pred_check
      _
    $region27: #{tpu_custom_call.1} parent=1 // pred_check_branch
      %59 = sbr.rel (0) target = $region29
    $region28: #{tpu_custom_call.1} parent=1 // pred_region
      %61 = dma.done [#allocation7], 1024
    $region29: #{tpu_custom_call.1} parent=1 // pred_fallthru
      _
    // Predicated region
    $region30: #{tpu_custom_call.1} parent=1 // pred_check
      _
    $region31: #{tpu_custom_call.1} parent=1 // pred_check_branch
      %63 = sbr.rel (0) target = $region33
    $region32: #{tpu_custom_call.1} parent=1 // pred_region
      %65 = dma.done [#allocation7], 1024
    $region33: #{tpu_custom_call.1} parent=1 // pred_fallthru
      _
    %p66 = scmp.eq.s32.totalorder 0, 0
    // Predicated region
    $region34: #{tpu_custom_call.1} parent=1 // pred_check
      %p67 = pneg %p66
    $region35: #{tpu_custom_call.1} parent=1 // pred_check_branch
      %69 = sbr.rel (%p67) target = $region37
    $region36: #{tpu_custom_call.1} parent=1 // pred_region
      %v70 = vld [vmem:[#allocation3] sm:$0xff]
      %v71 = vld [vmem:[#allocation6] sm:$0xff]
      %v72 = vld [vmem:[#allocation6 + $0x8] sm:$0xff]
      %v73 = vld [vmem:[#allocation6 + $0x10] sm:$0xff]
      %v74 = vld [vmem:[#allocation6 + $0x18] sm:$0xff]
      %v75 = vld [vmem:[#allocation6 + $0x20] sm:$0xff]
      %v76 = vld [vmem:[#allocation6 + $0x28] sm:$0xff]
      %v77 = vld [vmem:[#allocation6 + $0x30] sm:$0xff]
      %v78 = vld [vmem:[#allocation6 + $0x38] sm:$0xff]
      %v79 = vld [vmem:[%s2] sm:$0x1]
      %v81 = vperm.slane %v79, 0
      %vm83 = vcmask 523264
      %v85 = vsel %vm83, %v70, 0
      %87 = vmatpush.msra.mxu0 0.0
      %88 = vmatpush.msra.mxu0 0.0
      %89 = vmatpush.msra.mxu0 0.0
      %90 = vmatpush.msra.mxu0 0.0
      %91 = vmatpush.msra.mxu0 0.0
      %92 = vmatpush.msra.mxu0 0.0
      %93 = vmatpush.msra.mxu0 0.0
      %94 = vmatpush.msra.mxu0 0.0
      %95 = vmatpush.msra.mxu0 %v78
      %96 = vmatpush.msra.mxu0 %v77
      %97 = vmatpush.msra.mxu0 %v76
      %98 = vmatpush.msra.mxu0 %v75
      %99 = vmatpush.msra.mxu0 %v74
      %100 = vmatpush.msra.mxu0 %v73
      %101 = vmatpush.msra.mxu0 %v72
      %102 = vmatpush.msra.mxu0 %v71
      %103 = vmatmul.f32.gmra.mxu0 %v85
      %v104 = vpop.f32.mrf.mxu0
      %v105 = vadd.f32 %v81, %v104
      %106 = vdwg.mxu0
      %v107 = vtanh.pop %v105
      %108 = vst.msk [vmem:[#allocation2] sm:$0xff] %vm83, %v107
    $region37: #{tpu_custom_call.1} parent=1 // pred_fallthru
      _
    %v109 = vld [vmem:[#allocation2] sm:$0xff]
    %v110 = vld [vmem:[#allocation8] sm:$0xff]
    %v111 = vld [vmem:[#allocation8 + $0x8] sm:$0xff]
    %v112 = vld [vmem:[#allocation8 + $0x10] sm:$0xff]
    %v113 = vld [vmem:[#allocation8 + $0x18] sm:$0xff]
    %v114 = vld [vmem:[#allocation8 + $0x20] sm:$0xff]
    %v115 = vld [vmem:[#allocation8 + $0x28] sm:$0xff]
    %v116 = vld [vmem:[#allocation8 + $0x30] sm:$0xff]
    %v117 = vld [vmem:[#allocation8 + $0x38] sm:$0xff]
    %v118 = vld [vmem:[%s4] sm:$0x1]
    %v120 = vperm.slane %v118, 0
    %vm122 = vcmask 523264
    %v124 = vsel %vm122, %v109, 0
    %126 = vmatpush.msra.mxu0 0.0
    %127 = vmatpush.msra.mxu0 0.0
    %128 = vmatpush.msra.mxu0 0.0
    %129 = vmatpush.msra.mxu0 0.0
    %130 = vmatpush.msra.mxu0 0.0
    %131 = vmatpush.msra.mxu0 0.0
    %132 = vmatpush.msra.mxu0 0.0
    %133 = vmatpush.msra.mxu0 0.0
    %134 = vmatpush.msra.mxu0 %v117
    %135 = vmatpush.msra.mxu0 %v116
    %136 = vmatpush.msra.mxu0 %v115
    %137 = vmatpush.msra.mxu0 %v114
    %138 = vmatpush.msra.mxu0 %v113
    %139 = vmatpush.msra.mxu0 %v112
    %140 = vmatpush.msra.mxu0 %v111
    %141 = vmatpush.msra.mxu0 %v110
    %142 = vmatmul.f32.gmra.mxu0 %v124
    %v143 = vpop.f32.mrf.mxu0
    %v144 = vadd.f32 %v120, %v143
    %145 = vdwg.mxu0
    %146 = vst [vmem:[#allocation9] sm:$0xff] %v144
    // Predicated region
    $region38: #{tpu_custom_call.1} parent=1 // pred_check
      _
    $region39: #{tpu_custom_call.1} parent=1 // pred_check_branch
      %148 = sbr.rel (0) target = $region41
    $region40: #{tpu_custom_call.1} parent=1 // pred_region
      %150 = vsyncadd [#allocation5], 0
      %s152 = sshll.u32 [#allocation9], 4
      %s153 = int_to_ptr.vmem [resolvable:$true] %s152
      %s154 = sshll.u32 %s5, 4
      %s155 = int_to_ptr.hbm [resolvable:$true] %s154
      %157 = dma.vmem_to_hbm [thread:$0]  %s153, 128, %s155, [#allocation5]
    $region41: #{tpu_custom_call.1} parent=1 // pred_fallthru
      _
    // Predicated region
    $region42: #{tpu_custom_call.1} parent=1 // pred_check
      _
    $region43: #{tpu_custom_call.1} parent=1 // pred_check_branch
      %159 = sbr.rel (0) target = $region45
    $region44: #{tpu_custom_call.1} parent=1 // pred_region
      %161 = dma.done [#allocation5], 128
    $region45: #{tpu_custom_call.1} parent=1 // pred_fallthru
      _
    %162 = vsyncpa [#allocation4], 1
    %163 = vsyncpa [#allocation7], 1
    %164 = vsyncpa [#allocation5], 1

</llo_original>
